<compile_context>
chip_gen: v7x
topology: tpu7x:2x2x1
jax: 0.10.0
libtpu: 0.0.40
codegen_flags: <defaults>
</compile_context>

<pallas_src>
import math
from functools import lru_cache

import jax
import jax.numpy as jnp
from jax.experimental import pallas as pl
from jax.experimental.pallas import tpu as pltpu

STATE_DIM = 32
ACTION_DIM = 8
HIDDEN = 64
FUSED = 2 * HIDDEN                       # actor+critic hidden stacked -> 128 lanes
LOG2PI = math.log(2.0 * math.pi)

# Row layout of the packed bf16 parameter slab.
# bf16 packs 16 rows per sublane tile -> keep every sub-slice 16-row aligned.
W1_ROW = 0                                # (STATE_DIM, FUSED)
W2_ROW = W1_ROW + STATE_DIM               # 32  : (FUSED, FUSED) block-diagonal
W3_ROW = W2_ROW + FUSED                   # 160 : (FUSED, FUSED) heads
B1_ROW = W3_ROW + FUSED                   # 288 : (1, FUSED)
B2_ROW = B1_ROW + 16                      # 304
B3_ROW = B2_ROW + 16                      # 320
SLAB_ROWS = B3_ROW + 16                   # 336

# Single-tile cap (rows). Multiple of 16 (bf16 sublane packing).
MAX_TILE = 4096

# Raw (unfused) parameter shapes, torch-style layers stored [in, out].
_PARAM_SHAPES = [
    (STATE_DIM, HIDDEN), (1, HIDDEN),       # actor layer 1
    (HIDDEN, HIDDEN), (1, HIDDEN),          # actor layer 2
    (HIDDEN, ACTION_DIM), (1, ACTION_DIM),  # actor layer 3
    (STATE_DIM, HIDDEN), (1, HIDDEN),       # critic layer 1
    (HIDDEN, HIDDEN), (1, HIDDEN),          # critic layer 2
    (HIDDEN, 1), (1, 1),                    # critic layer 3
]


# ----------------------------------------------------------------------------
# Fused actor+critic MLP body (bf16 matmuls, f32 accumulate / activations).
# ----------------------------------------------------------------------------
def _fused_mlp(state_bf16, slab_ref):
    w1 = slab_ref[W1_ROW:W1_ROW + STATE_DIM, :]                  # (32, 128) bf16
    w2 = slab_ref[W2_ROW:W2_ROW + FUSED, :]                      # (128, 128) bf16
    w3 = slab_ref[W3_ROW:W3_ROW + FUSED, :]                      # (128, 128) bf16
    b1 = slab_ref[B1_ROW:B1_ROW + 1, :].astype(jnp.float32)      # (1, 128)
    b2 = slab_ref[B2_ROW:B2_ROW + 1, :].astype(jnp.float32)
    b3 = slab_ref[B3_ROW:B3_ROW + 1, :].astype(jnp.float32)

    h1 = jnp.tanh(
        jnp.dot(state_bf16, w1, preferred_element_type=jnp.float32) + b1
    ).astype(jnp.bfloat16)
    h2 = jnp.tanh(
        jnp.dot(h1, w2, preferred_element_type=jnp.float32) + b2
    ).astype(jnp.bfloat16)
    out = jnp.dot(h2, w3, preferred_element_type=jnp.float32) + b3   # (tb, 128) f32

    mu = jnp.tanh(out[:, 0:ACTION_DIM])                 # (tb, A) actor head (tanh)
    v = out[:, ACTION_DIM:ACTION_DIM + 1]               # (tb, 1) critic head (linear)
    return mu, v


# ----------------------------------------------------------------------------
# evaluate(state, action) -> out[:, 0] = log_prob, out[:, 1] = state_value
# dist_ref (SMEM, f32[3]) = [1/var, sqrt(var), -0.5*(A*log2pi + sum_log_var)]
# ----------------------------------------------------------------------------
def _evaluate_kernel(state_ref, action_ref, dist_ref, slab_ref, out_ref):
    mu, v = _fused_mlp(state_ref[...], slab_ref)

    inv_var = dist_ref[0]
    const = dist_ref[2]

    diff = action_ref[...] - mu
    maha = jnp.sum(diff * diff, axis=-1, keepdims=True)            # (tb, 1)
    logp = -0.5 * inv_var * maha + const

    out_ref[:, 0:1] = logp
    out_ref[:, 1:2] = v


# ----------------------------------------------------------------------------
# act(state) with eps ~ N(0, I) supplied:
#   out[:, 0:A] = action, out[:, A] = log_prob, out[:, A+1] = state_value
# ----------------------------------------------------------------------------
def _act_kernel(state_ref, eps_ref, dist_ref, slab_ref, out_ref):
    mu, v = _fused_mlp(state_ref[...], slab_ref)

    std = dist_ref[1]
    const = dist_ref[2]

    eps = eps_ref[...]
    action = mu + std * eps                                        # reparameterized
    logp = -0.5 * jnp.sum(eps * eps, axis=-1, keepdims=True) + const

    out_ref[:, 0:ACTION_DIM] = action
    out_ref[:, ACTION_DIM:ACTION_DIM + 1] = logp
    out_ref[:, ACTION_DIM + 1:ACTION_DIM + 2] = v


# ----------------------------------------------------------------------------
# pallas_call wrapper (cached per (kind, batch, tile))
# ----------------------------------------------------------------------------
def _tiling(b):
    """Single grid step whenever the batch fits one tile; else 4K-row tiles."""
    if b <= MAX_TILE:
        return b, 1
    return MAX_TILE, pl.cdiv(b, MAX_TILE)


@lru_cache(maxsize=None)
def _get_call(kind, b, tb, grid):
    if kind == "act":
        kernel, out_lanes = _act_kernel, ACTION_DIM + 2
    else:
        kernel, out_lanes = _evaluate_kernel, 2

    call = pl.pallas_call(
        kernel,
        grid=(grid,),
        in_specs=[
            pl.BlockSpec((tb, STATE_DIM), lambda i: (i, 0)),          # state (bf16)
            pl.BlockSpec((tb, ACTION_DIM), lambda i: (i, 0)),         # action / eps (f32)
            pl.BlockSpec(memory_space=pltpu.MemorySpace.SMEM),        # dist scalars f32[3]
            pl.BlockSpec((SLAB_ROWS, FUSED), lambda i: (0, 0)),       # param slab (resident)
        ],
        out_specs=pl.BlockSpec((tb, out_lanes), lambda i: (i, 0)),
        out_shape=jax.ShapeDtypeStruct((b, out_lanes), jnp.float32),
        compiler_params=pltpu.CompilerParams(
            dimension_semantics=("parallel",)),
    )
    return jax.jit(call)


# ----------------------------------------------------------------------------
# Host-side packing helpers
# ----------------------------------------------------------------------------
def _build_slab(params):
    (aw1, ab1, aw2, ab2, aw3, ab3,
     cw1, cb1, cw2, cb2, cw3, cb3) = params

    zero_h = jnp.zeros((HIDDEN, HIDDEN), jnp.float32)
    w1f = jnp.concatenate([aw1, cw1], axis=1)                          # (32, 128)
    w2f = jnp.concatenate(
        [jnp.concatenate([aw2, zero_h], axis=1),
         jnp.concatenate([zero_h, cw2], axis=1)], axis=0)              # (128, 128)
    w3f = jnp.zeros((FUSED, FUSED), jnp.float32)
    w3f = w3f.at[0:HIDDEN, 0:ACTION_DIM].set(aw3)
    w3f = w3f.at[HIDDEN:FUSED, ACTION_DIM:ACTION_DIM + 1].set(cw3)

    b1f = jnp.concatenate([ab1, cb1], axis=1)                          # (1, 128)
    b2f = jnp.concatenate([ab2, cb2], axis=1)
    b3f = jnp.zeros((1, FUSED), jnp.float32)
    b3f = b3f.at[0, 0:ACTION_DIM].set(ab3[0])
    b3f = b3f.at[0, ACTION_DIM].set(cb3[0, 0])

    slab = jnp.zeros((SLAB_ROWS, FUSED), jnp.float32)
    slab = slab.at[W1_ROW:W1_ROW + STATE_DIM].set(w1f)
    slab = slab.at[W2_ROW:W2_ROW + FUSED].set(w2f)
    slab = slab.at[W3_ROW:W3_ROW + FUSED].set(w3f)
    slab = slab.at[B1_ROW].set(b1f[0])
    slab = slab.at[B2_ROW].set(b2f[0])
    slab = slab.at[B3_ROW].set(b3f[0])
    return slab.astype(jnp.bfloat16)


def _build_dist_vec(action_var):
    """action_var is uniform (torch.full) -> 3 f32 scalars are exact."""
    var0 = action_var[0].astype(jnp.float32)
    a = action_var.shape[0]
    inv_var = 1.0 / var0
    std = jnp.sqrt(var0)
    sum_log_var = a * jnp.log(var0)
    const = -0.5 * (a * LOG2PI + sum_log_var)
    vec = jnp.stack([inv_var, std, const]).astype(jnp.float32)         # f32[3] -> SMEM
    return vec, sum_log_var


# ----------------------------------------------------------------------------
# ActorCritic module (JAX side)
# ----------------------------------------------------------------------------
class ActorCritic:
    def __init__(self, state_dim, action_dim, action_sd_init, key):
        assert state_dim == STATE_DIM and action_dim == ACTION_DIM
        self.action_dim = int(action_dim)

        keys = jax.random.split(key, len(_PARAM_SHAPES))
        params = []
        for k, shape in zip(keys, _PARAM_SHAPES):
            fan_in = shape[0] if shape[0] > 1 else shape[1]
            bound = 1.0 / math.sqrt(fan_in)
            params.append(jax.random.uniform(k, shape, jnp.float32, -bound, bound))
        self.params = tuple(params)
        self.slab = _build_slab(self.params)

        self.set_action_sd(action_sd_init)

    def set_action_sd(self, new_action_sd):
        self.action_var = jnp.full((self.action_dim,),
                                   new_action_sd * new_action_sd,
                                   dtype=jnp.float32)
        self.dist_vec, self._sum_log_var = _build_dist_vec(self.action_var)
        self._entropy = (0.5 * self.action_dim * (1.0 + LOG2PI)
                         + 0.5 * self._sum_log_var)

    def act(self, state, key):
        b = state.shape[0]
        # TODO(synk): MultivariateNormal.sample() RNG lives host-side (jax.random);
        # the kernel consumes the reparameterized eps.
        eps = jax.random.normal(key, (b, self.action_dim), jnp.float32)
        tb, grid = _tiling(b)
        out = _get_call("act", b, tb, grid)(
            state.astype(jnp.bfloat16), eps, self.dist_vec, self.slab)
        action = out[:, 0:ACTION_DIM]
        logp = out[:, ACTION_DIM]
        value = out[:, ACTION_DIM + 1:ACTION_DIM + 2]
        return action, logp, value

    def evaluate(self, state, action):
        b = state.shape[0]
        tb, grid = _tiling(b)
        out = _get_call("eval", b, tb, grid)(
            state.astype(jnp.bfloat16), action.astype(jnp.float32),
            self.dist_vec, self.slab)
        logp = out[:, 0]
        value = out[:, 1:2]
        # Entropy of a diagonal Gaussian depends only on action_var -> host scalar.
        entropy = jnp.full((b,), self._entropy, jnp.float32)
        return logp, value, entropy


# ----------------------------------------------------------------------------
# References for correctness checking
# ----------------------------------------------------------------------------
def _ref_forward_f32(params, state):
    (aw1, ab1, aw2, ab2, aw3, ab3,
     cw1, cb1, cw2, cb2, cw3, cb3) = params
    h = jnp.tanh(state @ aw1 + ab1)
    h = jnp.tanh(h @ aw2 + ab2)
    mu = jnp.tanh(h @ aw3 + ab3)
    g = jnp.tanh(state @ cw1 + cb1)
    g = jnp.tanh(g @ cw2 + cb2)
    v = g @ cw3 + cb3
    return mu, v


def _ref_forward_bf16(params, state):
    """Mirrors the kernel's bf16-weight / f32-accumulate math exactly."""
    (aw1, ab1, aw2, ab2, aw3, ab3,
     cw1, cb1, cw2, cb2, cw3, cb3) = params
    bf = lambda x: x.astype(jnp.bfloat16)
    f32 = jnp.float32
    s = bf(state)

    ha = jnp.tanh(jnp.dot(s, bf(aw1), preferred_element_type=f32)
                  + bf(ab1).astype(f32)).astype(jnp.bfloat16)
    ha = jnp.tanh(jnp.dot(ha, bf(aw2), preferred_element_type=f32)
                  + bf(ab2).astype(f32)).astype(jnp.bfloat16)
    mu = jnp.tanh(jnp.dot(ha, bf(aw3), preferred_element_type=f32)
                  + bf(ab3).astype(f32))

    hc = jnp.tanh(jnp.dot(s, bf(cw1), preferred_element_type=f32)
                  + bf(cb1).astype(f32)).astype(jnp.bfloat16)
    hc = jnp.tanh(jnp.dot(hc, bf(cw2), preferred_element_type=f32)
                  + bf(cb2).astype(f32)).astype(jnp.bfloat16)
    v = jnp.dot(hc, bf(cw3), preferred_element_type=f32) + bf(cb3).astype(f32)
    return mu, v


if __name__ == "__main__":
    key = jax.random.PRNGKey(0)
    k_param, k_state, k_action, k_sample = jax.random.split(key, 4)

    B = 16
    model = ActorCritic(STATE_DIM, ACTION_DIM, action_sd_init=0.6, key=k_param)
    state = jax.random.normal(k_state, (B, STATE_DIM), jnp.float32)
    action = jax.random.normal(k_action, (B, ACTION_DIM), jnp.float32)

    # evaluate(state, action)
    logp, value, entropy = model.evaluate(state, action)
    jax.block_until_ready((logp, value, entropy))

    # act(state)
    sampled_action, sample_logp, sample_value = model.act(state, k_sample)
    jax.block_until_ready((sampled_action, sample_logp, sample_value))

    # bf16-matched reference (same math as the kernel)
    mu_ref, v_ref = _ref_forward_bf16(model.params, state)
    var = model.action_var
    sum_log_var = jnp.sum(jnp.log(var))
    const = -0.5 * (ACTION_DIM * LOG2PI + sum_log_var)
    diff = action - mu_ref
    logp_ref = -0.5 * jnp.sum(diff * diff / var, axis=-1) + const
    ent_ref = jnp.full((B,), 0.5 * ACTION_DIM * (1.0 + LOG2PI) + 0.5 * sum_log_var)

    assert logp.shape == (B,) and value.shape == (B, 1) and entropy.shape == (B,)
    assert jnp.allclose(logp, logp_ref, atol=5e-2, rtol=5e-2)
    assert jnp.allclose(value, v_ref, atol=5e-2, rtol=5e-2)
    assert jnp.allclose(entropy, ent_ref, atol=1e-4, rtol=1e-4)

    # act() reference: same host-drawn eps from the same key
    eps = jax.random.normal(k_sample, (B, ACTION_DIM), jnp.float32)
    std = jnp.sqrt(var[0])
    ref_action = mu_ref + std * eps
    ref_act_logp = -0.5 * jnp.sum(eps * eps, axis=-1) + const

    assert sampled_action.shape == (B, ACTION_DIM)
    assert sample_logp.shape == (B,)
    assert sample_value.shape == (B, 1)
    assert jnp.allclose(sampled_action, ref_action, atol=5e-2, rtol=5e-2)
    assert jnp.allclose(sample_logp, ref_act_logp, atol=5e-2, rtol=5e-2)
    assert jnp.allclose(sample_value, v_ref, atol=5e-2, rtol=5e-2)

    # loose sanity check against the full-f32 (PyTorch-equivalent) forward
    mu_f32, v_f32 = _ref_forward_f32(model.params, state)
    assert jnp.allclose(value, v_f32, atol=0.1)
    assert jnp.allclose(sampled_action, mu_f32 + std * eps, atol=0.1)

    print("KERNEL_OK")
</pallas_src>

<mosaic_0001>
module attributes {stable_mosaic.version = 11 : i64} {
  func.func @_evaluate_kernel(%arg0: i32, %arg1: memref<16x32xbf16, #tpu.memory_space<vmem>>, %arg2: memref<16x8xf32, #tpu.memory_space<vmem>>, %arg3: memref<3xf32, #tpu.memory_space<smem>>, %arg4: memref<336x128xbf16, #tpu.memory_space<vmem>>, %arg5: memref<16x2xf32, #tpu.memory_space<vmem>>) attributes {dimension_semantics = [#tpu.dimension_semantics<parallel>], iteration_bounds = array<i64: 1>, scalar_prefetch = 0 : i64, scratch_operands = 0 : i64, tpu.core_type = #tpu.core_type<tc>, window_params = [{transform_indices = @transform_0, window_bounds = array<i64: 16, 32>}, {transform_indices = @transform_1, window_bounds = array<i64: 16, 8>}, {transform_indices = @transform_2, window_bounds = array<i64: 3>}, {pipeline_mode = #tpu.pipeline_mode<synchronous>, transform_indices = @transform_3, window_bounds = array<i64: 336, 128>}, {transform_indices = @transform_4, window_bounds = array<i64: 16, 2>}]} {
    %c0 = arith.constant 0 : index
    %c0_0 = arith.constant 0 : index
    %0 = vector.load %arg1[%c0, %c0_0] : memref<16x32xbf16, #tpu.memory_space<vmem>>, vector<16x32xbf16>
    %c0_1 = arith.constant 0 : index
    %c0_2 = arith.constant 0 : index
    %1 = vector.load %arg4[%c0_1, %c0_2] : memref<336x128xbf16, #tpu.memory_space<vmem>>, vector<32x128xbf16>
    %c32 = arith.constant 32 : index
    %c0_3 = arith.constant 0 : index
    %2 = vector.load %arg4[%c32, %c0_3] : memref<336x128xbf16, #tpu.memory_space<vmem>>, vector<128x128xbf16>
    %c160 = arith.constant 160 : index
    %c0_4 = arith.constant 0 : index
    %3 = vector.load %arg4[%c160, %c0_4] : memref<336x128xbf16, #tpu.memory_space<vmem>>, vector<128x128xbf16>
    %c288 = arith.constant 288 : index
    %c0_5 = arith.constant 0 : index
    %4 = vector.load %arg4[%c288, %c0_5] : memref<336x128xbf16, #tpu.memory_space<vmem>>, vector<1x128xbf16>
    %5 = arith.extf %4 : vector<1x128xbf16> to vector<1x128xf32>
    %c304 = arith.constant 304 : index
    %c0_6 = arith.constant 0 : index
    %6 = vector.load %arg4[%c304, %c0_6] : memref<336x128xbf16, #tpu.memory_space<vmem>>, vector<1x128xbf16>
    %7 = arith.extf %6 : vector<1x128xbf16> to vector<1x128xf32>
    %c320 = arith.constant 320 : index
    %c0_7 = arith.constant 0 : index
    %8 = vector.load %arg4[%c320, %c0_7] : memref<336x128xbf16, #tpu.memory_space<vmem>>, vector<1x128xbf16>
    %9 = arith.extf %8 : vector<1x128xbf16> to vector<1x128xf32>
    %cst = arith.constant dense<0.000000e+00> : vector<16x128xf32>
    %10 = tpu.matmul %0, %1, %cst {dimension_numbers = #tpu.dot_dimension_numbers<[1], [0], [0], [1], [0, 0, 1, 1], [], []>} : vector<16x32xbf16>, vector<32x128xbf16>, vector<16x128xf32> -> vector<16x128xf32>
    %11 = vector.broadcast %5 : vector<1x128xf32> to vector<16x128xf32>
    %12 = arith.addf %10, %11 : vector<16x128xf32>
    %13 = math.tanh %12 : vector<16x128xf32>
    %14 = arith.truncf %13 : vector<16x128xf32> to vector<16x128xbf16>
    %cst_8 = arith.constant dense<0.000000e+00> : vector<16x128xf32>
    %15 = tpu.matmul %14, %2, %cst_8 {dimension_numbers = #tpu.dot_dimension_numbers<[1], [0], [0], [1], [0, 0, 1, 1], [], []>} : vector<16x128xbf16>, vector<128x128xbf16>, vector<16x128xf32> -> vector<16x128xf32>
    %16 = vector.broadcast %7 : vector<1x128xf32> to vector<16x128xf32>
    %17 = arith.addf %15, %16 : vector<16x128xf32>
    %18 = math.tanh %17 : vector<16x128xf32>
    %19 = arith.truncf %18 : vector<16x128xf32> to vector<16x128xbf16>
    %cst_9 = arith.constant dense<0.000000e+00> : vector<16x128xf32>
    %20 = tpu.matmul %19, %3, %cst_9 {dimension_numbers = #tpu.dot_dimension_numbers<[1], [0], [0], [1], [0, 0, 1, 1], [], []>} : vector<16x128xbf16>, vector<128x128xbf16>, vector<16x128xf32> -> vector<16x128xf32>
    %21 = vector.broadcast %9 : vector<1x128xf32> to vector<16x128xf32>
    %22 = arith.addf %20, %21 : vector<16x128xf32>
    %23 = vector.extract_strided_slice %22 {offsets = [0, 0], sizes = [16, 8], strides = [1, 1]} : vector<16x128xf32> to vector<16x8xf32>
    %24 = math.tanh %23 : vector<16x8xf32>
    %25 = vector.extract_strided_slice %22 {offsets = [0, 8], sizes = [16, 1], strides = [1, 1]} : vector<16x128xf32> to vector<16x1xf32>
    %c0_10 = arith.constant 0 : index
    %26 = memref.load %arg3[%c0_10] : memref<3xf32, #tpu.memory_space<smem>>
    %c2 = arith.constant 2 : index
    %27 = memref.load %arg3[%c2] : memref<3xf32, #tpu.memory_space<smem>>
    %c0_11 = arith.constant 0 : index
    %c0_12 = arith.constant 0 : index
    %28 = vector.load %arg2[%c0_11, %c0_12] : memref<16x8xf32, #tpu.memory_space<vmem>>, vector<16x8xf32>
    %29 = arith.subf %28, %24 : vector<16x8xf32>
    %30 = arith.mulf %29, %29 : vector<16x8xf32>
    %cst_13 = arith.constant dense<0.000000e+00> : vector<16xf32>
    %31 = vector.multi_reduction <add>, %30, %cst_13 [1] : vector<16x8xf32> to vector<16xf32>
    %32 = vector.shape_cast %31 : vector<16xf32> to vector<16x1xf32>
    %cst_14 = arith.constant -5.000000e-01 : f32
    %33 = arith.mulf %cst_14, %26 : f32
    %34 = vector.broadcast %33 : f32 to vector<16x1xf32>
    %35 = arith.mulf %34, %32 : vector<16x1xf32>
    %36 = vector.broadcast %27 : f32 to vector<16x1xf32>
    %37 = arith.addf %35, %36 : vector<16x1xf32>
    %c0_15 = arith.constant 0 : index
    %c0_16 = arith.constant 0 : index
    %38 = vector.load %arg5[%c0_15, %c0_16] : memref<16x2xf32, #tpu.memory_space<vmem>>, vector<16x1xf32>
    tpu.vector_store %arg5[%c0_15, %c0_16], %37 {strides = array<i32>} : memref<16x2xf32, #tpu.memory_space<vmem>>, vector<16x1xf32>,
    %c0_17 = arith.constant 0 : index
    %c1 = arith.constant 1 : index
    %39 = vector.load %arg5[%c0_17, %c1] : memref<16x2xf32, #tpu.memory_space<vmem>>, vector<16x1xf32>
    tpu.vector_store %arg5[%c0_17, %c1], %25 {strides = array<i32>} : memref<16x2xf32, #tpu.memory_space<vmem>>, vector<16x1xf32>,
    return
  }
  func.func @transform_0(%arg0: i32) -> (i32, i32) {
    %c0_i32 = arith.constant 0 : i32
    %c0_i32_0 = arith.constant 0 : i32
    return %arg0, %c0_i32 : i32, i32
  }
  func.func @transform_1(%arg0: i32) -> (i32, i32) {
    %c0_i32 = arith.constant 0 : i32
    %c0_i32_0 = arith.constant 0 : i32
    return %arg0, %c0_i32 : i32, i32
  }
  func.func @transform_2(%arg0: i32) -> i32 {
    %c0_i32 = arith.constant 0 : i32
    %c0_i32_0 = arith.constant 0 : i32
    return %c0_i32 : i32
  }
  func.func @transform_3(%arg0: i32) -> (i32, i32) {
    %c0_i32 = arith.constant 0 : i32
    %c0_i32_0 = arith.constant 0 : i32
    %c0_i32_1 = arith.constant 0 : i32
    return %c0_i32, %c0_i32_0 : i32, i32
  }
  func.func @transform_4(%arg0: i32) -> (i32, i32) {
    %c0_i32 = arith.constant 0 : i32
    %c0_i32_0 = arith.constant 0 : i32
    return %arg0, %c0_i32 : i32, i32
  }
}

</mosaic_0001>

<llo_original>
// kernel: tpu_custom_call.1
$region0: #{tpu_custom_call.1}
  #allocation0 [shape = 'u32[]', space=smem, size = 0x4, offset = 0x4, fixed_abs, tag = 'smem constant byte address 0x4 - core index']
  #allocation1 [shape = 'u32[144,128]{1,0:T(1,128)}', space=vmem, size = 0x12000, scoped, tag = 'internal scratch']
  %s0 = inlined_call_operand.vmem [shape: bf16[16,32], index: 0, kind: input, shape index: {}]
  %s1 = inlined_call_operand.vmem [shape: f32[16,8], index: 1, kind: input, shape index: {}]
  %s2 = inlined_call_operand.vmem [shape: f32[3], index: 2, kind: input, shape index: {}]
  %s3 = inlined_call_operand.hbm [shape: bf16[336,128], index: 3, kind: input, shape index: {}]
  %s4 = inlined_call_operand.vmem [shape: f32[16,2], index: 4, kind: output, shape index: {}]
  %s5 = sld [smem:[#allocation0]]
  $region34: #{tpu_custom_call.1} parent=0
    _
  %s7 = ssub.s32 1, %s5
  %s8 = scalar_select 0, %s7, %s5
  $region1: #{tpu_custom_call.1} parent=0
    #allocation2 [shape = 'u8[512]{0}', space=smem, size = 0x200, scoped, tag = 'input window, operand 2, single buffered']
    #allocation3 [shape = 's32[1]{0}', space=sflag, size = 0x4, scoped, tag = 'scoped memory for tpu_custom_call.1']
    #allocation4 [shape = 's32[1]{0}', space=sflag, size = 0x4, scoped, tag = 'scoped memory for tpu_custom_call.1']
    #allocation5 [shape = 'u8[86016]{0}', space=vmem, size = 0x15000, scoped, tag = 'input window, operand 3, single buffered']
    %9 = vsyncpa [#allocation4], 0
    %10 = vsyncpa [#allocation3], 0
    // Predicated region
    $region2: #{tpu_custom_call.1} parent=1 // pred_check
      _
    $region3: #{tpu_custom_call.1} parent=1 // pred_check_branch
      %12 = sbr.rel (0) target = $region5
    $region4: #{tpu_custom_call.1} parent=1 // pred_region
      _
    $region5: #{tpu_custom_call.1} parent=1 // pred_fallthru
      _
    // Predicated region
    $region6: #{tpu_custom_call.1} parent=1 // pred_check
      _
    $region7: #{tpu_custom_call.1} parent=1 // pred_check_branch
      %14 = sbr.rel (0) target = $region9
    $region8: #{tpu_custom_call.1} parent=1 // pred_region
      _
    $region9: #{tpu_custom_call.1} parent=1 // pred_fallthru
      _
    // Predicated region
    $region10: #{tpu_custom_call.1} parent=1 // pred_check
      _
    $region11: #{tpu_custom_call.1} parent=1 // pred_check_branch
      %16 = sbr.rel (0) target = $region13
    $region12: #{tpu_custom_call.1} parent=1 // pred_region
      %s18 = ssub.s32 16, 16
      %19 = vsyncadd [#allocation4], %s18
      %s21 = sshll.u32 %s2, 4
      %s22 = int_to_ptr.vmem [resolvable:$true] %s21
      %24 = dma.vmem_to_smem %s22, 16, [#allocation2], [#allocation4]
    $region13: #{tpu_custom_call.1} parent=1 // pred_fallthru
      _
    // Predicated region
    $region14: #{tpu_custom_call.1} parent=1 // pred_check
      _
    $region15: #{tpu_custom_call.1} parent=1 // pred_check_branch
      %26 = sbr.rel (0) target = $region17
    $region16: #{tpu_custom_call.1} parent=1 // pred_region
      %s28 = ssub.s32 2688, 2688
      %29 = vsyncadd [#allocation3], %s28
      %s30 = sshll.u32 [#allocation5], 4
      %s31 = int_to_ptr.vmem [resolvable:$true] %s30
      %36 = dma.hbm_to_vmem [thread:$0]  %s3, 2688, %s31, [#allocation3], 64, 64, 4
    $region17: #{tpu_custom_call.1} parent=1 // pred_fallthru
      _
    // Predicated region
    $region18: #{tpu_custom_call.1} parent=1 // pred_check
      _
    $region19: #{tpu_custom_call.1} parent=1 // pred_check_branch
      %38 = sbr.rel (0) target = $region21
    $region20: #{tpu_custom_call.1} parent=1 // pred_region
      %39 = dma.done [#allocation4], 16
    $region21: #{tpu_custom_call.1} parent=1 // pred_fallthru
      _
    // Predicated region
    $region22: #{tpu_custom_call.1} parent=1 // pred_check
      _
    $region23: #{tpu_custom_call.1} parent=1 // pred_check_branch
      %41 = sbr.rel (0) target = $region25
    $region24: #{tpu_custom_call.1} parent=1 // pred_region
      %42 = dma.done [#allocation3], 2688
    $region25: #{tpu_custom_call.1} parent=1 // pred_fallthru
      _
    %43 = sfence
    %v45 = vld [vmem:[%s0] sm:$0xf]
    %v46 = vld [vmem:[%s0 + $0x4] sm:$0xf]
    %v47 = vld [vmem:[#allocation5] sm:$0xf]
    %v48 = vld [vmem:[#allocation5 + $0x4] sm:$0xf]
    %v49 = vld [vmem:[#allocation5 + $0x8] sm:$0xf]
    %v50 = vld [vmem:[#allocation5 + $0xc] sm:$0xf]
    %v51 = vld [vmem:[#allocation5 + $0x10] sm:$0xf]
    %v52 = vld [vmem:[#allocation5 + $0x14] sm:$0xf]
    %v53 = vld [vmem:[#allocation5 + $0x18] sm:$0xf]
    %v54 = vld [vmem:[#allocation5 + $0x1c] sm:$0xf]
    %v55 = vld [vmem:[#allocation5 + $0x20] sm:$0xf]
    %v56 = vld [vmem:[#allocation5 + $0x24] sm:$0xf]
    %v57 = vld [vmem:[#allocation5 + $0x28] sm:$0xf]
    %v58 = vld [vmem:[#allocation5 + $0x2c] sm:$0xf]
    %v59 = vld [vmem:[#allocation5 + $0x30] sm:$0xf]
    %v60 = vld [vmem:[#allocation5 + $0x34] sm:$0xf]
    %v61 = vld [vmem:[#allocation5 + $0x38] sm:$0xf]
    %v62 = vld [vmem:[#allocation5 + $0x3c] sm:$0xf]
    %v63 = vld [vmem:[#allocation5 + $0x40] sm:$0xf]
    %v64 = vld [vmem:[#allocation5 + $0x44] sm:$0xf]
    %v65 = vld [vmem:[#allocation5 + $0x48] sm:$0xf]
    %v66 = vld [vmem:[#allocation5 + $0x4c] sm:$0xf]
    %v67 = vld [vmem:[#allocation5 + $0x50] sm:$0xf]
    %v68 = vld [vmem:[#allocation5 + $0x54] sm:$0xf]
    %v69 = vld [vmem:[#allocation5 + $0x58] sm:$0xf]
    %v70 = vld [vmem:[#allocation5 + $0x5c] sm:$0xf]
    %v71 = vld [vmem:[#allocation5 + $0x60] sm:$0xf]
    %v72 = vld [vmem:[#allocation5 + $0x64] sm:$0xf]
    %v73 = vld [vmem:[#allocation5 + $0x68] sm:$0xf]
    %v74 = vld [vmem:[#allocation5 + $0x6c] sm:$0xf]
    %v75 = vld [vmem:[#allocation5 + $0x70] sm:$0xf]
    %v76 = vld [vmem:[#allocation5 + $0x74] sm:$0xf]
    %v77 = vld [vmem:[#allocation5 + $0x78] sm:$0xf]
    %v78 = vld [vmem:[#allocation5 + $0x7c] sm:$0xf]
    %v79 = vld [vmem:[#allocation5 + $0x80] sm:$0xf]
    %v80 = vld [vmem:[#allocation5 + $0x84] sm:$0xf]
    %v81 = vld [vmem:[#allocation5 + $0x88] sm:$0xf]
    %v82 = vld [vmem:[#allocation5 + $0x8c] sm:$0xf]
    %v83 = vld [vmem:[#allocation5 + $0x90] sm:$0x1]
    %v84 = vunpack.c.l.bf16 %v83
    %v85 = vld [vmem:[#allocation5 + $0x98] sm:$0x1]
    %v86 = vunpack.c.l.bf16 %v85
    %v87 = vld [vmem:[#allocation5 + $0xa0] sm:$0x1]
    %v88 = vunpack.c.l.bf16 %v87
    %v89 = vlaneseq
    %v90 = vshrl.u32 %v89, 7
    %v91 = vsub.s32 0, %v90
    %v92 = vrot.slane %v84, %v91
    %v95 = vunpack.c.l.b16 %v45
    %v96 = vunpack.c.l.b16 %v46
    %v97 = vpack.c.b16 %v96, %v95
    %v102 = vunpack.c.l.b16 %v47
    %v103 = vunpack.c.l.b16 %v48
    %v104 = vunpack.c.l.b16 %v49
    %v105 = vunpack.c.l.b16 %v50
    %v106 = vpack.c.b16 %v103, %v102
    %v107 = vpack.c.b16 %v105, %v104
    %vm110 = vcmask 261120
    %v112 = vsel %vm110, %v97, 0
    %114 = vmatprep.subr.bf16.mxu0 0
    %115 = vmatpush1.bf16.msra.mxu0 %v106
    %116 = vmatprep.subr.bf16.mxu0 0
    %117 = vmatpush1.bf16.msra.mxu0 %v107
    %118 = vmatprep.subr.bf16.mxu0 0
    %119 = vmatpush1.bf16.msra.mxu0 0
    %120 = vmatprep.subr.bf16.mxu0 0
    %121 = vmatpush1.bf16.msra.mxu0 0
    %122 = vmatprep.subr.bf16.mxu0 0
    %123 = vmatpush1.bf16.msra.mxu0 0
    %124 = vmatprep.subr.bf16.mxu0 0
    %125 = vmatpush1.bf16.msra.mxu0 0
    %126 = vmatprep.subr.bf16.mxu0 0
    %127 = vmatpush1.bf16.msra.mxu0 0
    %128 = vmatprep.subr.bf16.mxu0 0
    %129 = vmatpush1.bf16.msra.mxu0 0
    %130 = vmatprep.subr.bf16.mxu0 0
    %131 = vmatpush1.bf16.msra.mxu0 0
    %132 = vmatprep.subr.bf16.mxu0 0
    %133 = vmatpush1.bf16.msra.mxu0 0
    %134 = vmatprep.subr.bf16.mxu0 0
    %135 = vmatpush1.bf16.msra.mxu0 0
    %136 = vmatprep.subr.bf16.mxu0 0
    %137 = vmatpush1.bf16.msra.mxu0 0
    %138 = vmatprep.subr.bf16.mxu0 0
    %139 = vmatpush1.bf16.msra.mxu0 0
    %140 = vmatprep.subr.bf16.mxu0 0
    %141 = vmatpush1.bf16.msra.mxu0 0
    %142 = vmatprep.subr.bf16.mxu0 0
    %143 = vmatpush1.bf16.msra.mxu0 0
    %144 = vmatprep.subr.bf16.mxu0 0
    %145 = vmatpush1.bf16.msra.mxu0 0
    %146 = vmatprep.mubr.bf16.mxu0 0
    %147 = vmatmul.mubr.bf16.gmra.mrb[0].mxu0 %v112
    %v148 = vpop.f32.mrb[0].mxu0
    %v149 = vadd.f32 %v92, %v148
    %v150 = vpop.f32.mrb[0].mxu0
    %v151 = vpop.f32.mrb[0].mxu0
    %v152 = vadd.f32 %v92, %v151
    %v153 = vpop.f32.mrb[0].mxu0
    %154 = vdwg.mxu0
    %v155 = vtanh.pop %v149
    %v156 = vtanh.pop %v152
    %v157 = vpack.c.bf16 %v156, %v155
    %v158 = vlaneseq
    %v159 = vshrl.u32 %v158, 7
    %v160 = vsub.s32 0, %v159
    %v161 = vrot.slane %v86, %v160
    %v178 = vunpack.c.l.b16 %v51
    %v179 = vunpack.c.l.b16 %v52
    %v180 = vunpack.c.l.b16 %v53
    %v181 = vunpack.c.l.b16 %v54
    %v182 = vunpack.c.l.b16 %v55
    %v183 = vunpack.c.l.b16 %v56
    %v184 = vunpack.c.l.b16 %v57
    %v185 = vunpack.c.l.b16 %v58
    %v186 = vunpack.c.l.b16 %v59
    %v187 = vunpack.c.l.b16 %v60
    %v188 = vunpack.c.l.b16 %v61
    %v189 = vunpack.c.l.b16 %v62
    %v190 = vunpack.c.l.b16 %v63
    %v191 = vunpack.c.l.b16 %v64
    %v192 = vunpack.c.l.b16 %v65
    %v193 = vunpack.c.l.b16 %v66
    %v194 = vpack.c.b16 %v179, %v178
    %v195 = vpack.c.b16 %v181, %v180
    %v196 = vpack.c.b16 %v183, %v182
    %v197 = vpack.c.b16 %v185, %v184
    %v198 = vpack.c.b16 %v187, %v186
    %v199 = vpack.c.b16 %v189, %v188
    %v200 = vpack.c.b16 %v191, %v190
    %v201 = vpack.c.b16 %v193, %v192
    %210 = vmatprep.subr.bf16.mxu0 0
    %211 = vmatpush1.bf16.msra.mxu0 %v194
    %212 = vmatprep.subr.bf16.mxu0 0
    %213 = vmatpush1.bf16.msra.mxu0 %v195
    %214 = vmatprep.subr.bf16.mxu0 0
    %215 = vmatpush1.bf16.msra.mxu0 %v196
    %216 = vmatprep.subr.bf16.mxu0 0
    %217 = vmatpush1.bf16.msra.mxu0 %v197
    %218 = vmatprep.subr.bf16.mxu0 0
    %219 = vmatpush1.bf16.msra.mxu0 %v198
    %220 = vmatprep.subr.bf16.mxu0 0
    %221 = vmatpush1.bf16.msra.mxu0 %v199
    %222 = vmatprep.subr.bf16.mxu0 0
    %223 = vmatpush1.bf16.msra.mxu0 %v200
    %224 = vmatprep.subr.bf16.mxu0 0
    %225 = vmatpush1.bf16.msra.mxu0 %v201
    %226 = vmatprep.subr.bf16.mxu0 0
    %227 = vmatpush1.bf16.msra.mxu0 0
    %228 = vmatprep.subr.bf16.mxu0 0
    %229 = vmatpush1.bf16.msra.mxu0 0
    %230 = vmatprep.subr.bf16.mxu0 0
    %231 = vmatpush1.bf16.msra.mxu0 0
    %232 = vmatprep.subr.bf16.mxu0 0
    %233 = vmatpush1.bf16.msra.mxu0 0
    %234 = vmatprep.subr.bf16.mxu0 0
    %235 = vmatpush1.bf16.msra.mxu0 0
    %236 = vmatprep.subr.bf16.mxu0 0
    %237 = vmatpush1.bf16.msra.mxu0 0
    %238 = vmatprep.subr.bf16.mxu0 0
    %239 = vmatpush1.bf16.msra.mxu0 0
    %240 = vmatprep.subr.bf16.mxu0 0
    %241 = vmatpush1.bf16.msra.mxu0 0
    %242 = vmatprep.mubr.bf16.mxu0 0
    %243 = vmatmul.mubr.bf16.gmra.mrb[0].mxu0 %v157
    %v244 = vpop.f32.mrb[0].mxu0
    %v245 = vadd.f32 %v161, %v244
    %v246 = vpop.f32.mrb[0].mxu0
    %v247 = vpop.f32.mrb[0].mxu0
    %v248 = vadd.f32 %v161, %v247
    %v249 = vpop.f32.mrb[0].mxu0
    %250 = vdwg.mxu0
    %v251 = vtanh.pop %v245
    %v252 = vtanh.pop %v248
    %v253 = vpack.c.bf16 %v252, %v251
    %v254 = vlaneseq
    %v255 = vshrl.u32 %v254, 7
    %v256 = vsub.s32 0, %v255
    %v257 = vrot.slane %v88, %v256
    %v274 = vunpack.c.l.b16 %v67
    %v275 = vunpack.c.l.b16 %v68
    %v276 = vunpack.c.l.b16 %v69
    %v277 = vunpack.c.l.b16 %v70
    %v278 = vunpack.c.l.b16 %v71
    %v279 = vunpack.c.l.b16 %v72
    %v280 = vunpack.c.l.b16 %v73
    %v281 = vunpack.c.l.b16 %v74
    %v282 = vunpack.c.l.b16 %v75
    %v283 = vunpack.c.l.b16 %v76
    %v284 = vunpack.c.l.b16 %v77
    %v285 = vunpack.c.l.b16 %v78
    %v286 = vunpack.c.l.b16 %v79
    %v287 = vunpack.c.l.b16 %v80
    %v288 = vunpack.c.l.b16 %v81
    %v289 = vunpack.c.l.b16 %v82
    %v290 = vpack.c.b16 %v275, %v274
    %v291 = vpack.c.b16 %v277, %v276
    %v292 = vpack.c.b16 %v279, %v278
    %v293 = vpack.c.b16 %v281, %v280
    %v294 = vpack.c.b16 %v283, %v282
    %v295 = vpack.c.b16 %v285, %v284
    %v296 = vpack.c.b16 %v287, %v286
    %v297 = vpack.c.b16 %v289, %v288
    %306 = vmatprep.subr.bf16.mxu0 0
    %307 = vmatpush1.bf16.msra.mxu0 %v290
    %308 = vmatprep.subr.bf16.mxu0 0
    %309 = vmatpush1.bf16.msra.mxu0 %v291
    %310 = vmatprep.subr.bf16.mxu0 0
    %311 = vmatpush1.bf16.msra.mxu0 %v292
    %312 = vmatprep.subr.bf16.mxu0 0
    %313 = vmatpush1.bf16.msra.mxu0 %v293
    %314 = vmatprep.subr.bf16.mxu0 0
    %315 = vmatpush1.bf16.msra.mxu0 %v294
    %316 = vmatprep.subr.bf16.mxu0 0
    %317 = vmatpush1.bf16.msra.mxu0 %v295
    %318 = vmatprep.subr.bf16.mxu0 0
    %319 = vmatpush1.bf16.msra.mxu0 %v296
    %320 = vmatprep.subr.bf16.mxu0 0
    %321 = vmatpush1.bf16.msra.mxu0 %v297
    %322 = vmatprep.subr.bf16.mxu0 0
    %323 = vmatpush1.bf16.msra.mxu0 0
    %324 = vmatprep.subr.bf16.mxu0 0
    %325 = vmatpush1.bf16.msra.mxu0 0
    %326 = vmatprep.subr.bf16.mxu0 0
    %327 = vmatpush1.bf16.msra.mxu0 0
    %328 = vmatprep.subr.bf16.mxu0 0
    %329 = vmatpush1.bf16.msra.mxu0 0
    %330 = vmatprep.subr.bf16.mxu0 0
    %331 = vmatpush1.bf16.msra.mxu0 0
    %332 = vmatprep.subr.bf16.mxu0 0
    %333 = vmatpush1.bf16.msra.mxu0 0
    %334 = vmatprep.subr.bf16.mxu0 0
    %335 = vmatpush1.bf16.msra.mxu0 0
    %336 = vmatprep.subr.bf16.mxu0 0
    %337 = vmatpush1.bf16.msra.mxu0 0
    %338 = vmatprep.mubr.bf16.mxu0 0
    %339 = vmatmul.mubr.bf16.gmra.mrb[0].mxu0 %v253
    %v340 = vpop.f32.mrb[0].mxu0
    %v341 = vadd.f32 %v257, %v340
    %v342 = vpop.f32.mrb[0].mxu0
    %v343 = vpop.f32.mrb[0].mxu0
    %v344 = vadd.f32 %v257, %v343
    %v345 = vpop.f32.mrb[0].mxu0
    %346 = vdwg.mxu0
    %v347 = vtanh.pop %v341
    %v348 = vtanh.pop %v344
    %s349 = sld [smem:[#allocation2]]
    %s350 = sld [smem:[#allocation2 + $0x2]]
    %v351 = vld [vmem:[%s1] sm:$0xff]
    %v352 = vld [vmem:[%s1 + $0x8] sm:$0xff]
    %v353 = vsub.f32 %v351, %v347
    %v354 = vsub.f32 %v352, %v348
    %v355 = vmul.f32 %v353, %v353
    %v356 = vmul.f32 %v354, %v354
    %vm357 = vcmask 64512
    %v358 = vsel %vm357, %v355, 0.0
    %359 = vadd.xlane.f32.xlu0 %v358
    %v360 = vpop.xlane.xlu0 %359
    %v361 = vsel %vm357, %v356, 0.0
    %362 = vadd.xlane.f32.xlu0 %v361
    %v363 = vpop.xlane.xlu0 %362
    %s364 = smul.f32 %s349, -0.5
    %v365 = vstv %s364
    %v366 = vmul.f32 %v365, %v360
    %v367 = vmul.f32 %v365, %v363
    %v368 = vstv %s350
    %v369 = vadd.f32 %v366, %v368
    %v370 = vadd.f32 %v367, %v368
    %vm371 = vcmask 7168
    %372 = vst.msk [vmem:[%s4] sm:$0xff] %vm371, %v369
    %373 = vst.msk [vmem:[%s4 + $0x8] sm:$0xff] %vm371, %v370
    %376 = vrot.lane.b32.xlu0 %v341, 121
    %v377 = vpop.permute.xlu0 %376
    %378 = vrot.lane.b32.xlu0 %v344, 121
    %v379 = vpop.permute.xlu0 %378
    %vm382 = vcmask 15368
    %383 = vst.msk [vmem:[%s4] sm:$0xff] %vm382, %v377
    %384 = vst.msk [vmem:[%s4 + $0x8] sm:$0xff] %vm382, %v379
    // Predicated region
    $region26: #{tpu_custom_call.1} parent=1 // pred_check
      _
    $region27: #{tpu_custom_call.1} parent=1 // pred_check_branch
      %386 = sbr.rel (0) target = $region29
    $region28: #{tpu_custom_call.1} parent=1 // pred_region
      _
    $region29: #{tpu_custom_call.1} parent=1 // pred_fallthru
      _
    // Predicated region
    $region30: #{tpu_custom_call.1} parent=1 // pred_check
      _
    $region31: #{tpu_custom_call.1} parent=1 // pred_check_branch
      %388 = sbr.rel (0) target = $region33
    $region32: #{tpu_custom_call.1} parent=1 // pred_region
      _
    $region33: #{tpu_custom_call.1} parent=1 // pred_fallthru
      _
    %389 = vsyncpa [#allocation3], 1
    %390 = vsyncpa [#allocation4], 1

</llo_original>
